<compile_context>
chip_gen: v7x
topology: tpu7x:2x2x1
jax: 0.10.0
libtpu: 0.0.40
codegen_flags: <defaults>
</compile_context>

<pallas_src>
import jax
import jax.numpy as jnp
from jax.experimental import pallas as pl
from jax.experimental.pallas import tpu as pltpu


def _round_up(x, m):
    return (x + m - 1) // m * m


# ---------------- kernel 1: SplineConv + ReLU (grid = (row tiles, spline kernels)) ---------
def spline_kernel(x0bf_ref, x0t_ref, b_ref, wsp_ref, wroot_ref, bias_ref,
                  x1_ref, acc_ref):
    k = pl.program_id(1)

    @pl.when(k == 0)
    def _():
        # root-weight term + bias initializes the accumulator for this row tile
        acc_ref[...] = (jnp.dot(x0t_ref[...], wroot_ref[...],
                                preferred_element_type=jnp.float32)
                        + bias_ref[...])

    # streamed bf16 (TILE_M, N) block of the degree-normalized aggregation matrix B[k]
    agg = jnp.dot(b_ref[...], x0bf_ref[...], preferred_element_type=jnp.float32)
    # per-kernel spline weight (128-wide contraction thanks to lane padding)
    acc_ref[...] += jnp.dot(agg, wsp_ref[k], preferred_element_type=jnp.float32)

    @pl.when(k == pl.num_programs(1) - 1)
    def _():
        x1_ref[...] = jnp.maximum(acc_ref[...], 0.0)   # F.relu after conv


# ---------------- kernel 2: GINConv(MLP) + final Linear (grid = (row tiles,)) --------------
def gin_final_kernel(a_ref, x1bf_ref, x0t_ref, x1t_ref,
                     w1_ref, b1_ref, w2_ref, b2_ref,
                     w3_ref, b3_ref, w4_ref, b4_ref,
                     wf0_ref, wf1_ref, wf2_ref, bf_ref,
                     out_ref):
    # GIN eps=0: h = (A + I) @ x1   (self-term folded into A_hat in the wrapper)
    h = jnp.dot(a_ref[...], x1bf_ref[...], preferred_element_type=jnp.float32)
    for w_ref, b_ref in ((w1_ref, b1_ref), (w2_ref, b2_ref),
                         (w3_ref, b3_ref), (w4_ref, b4_ref)):
        h = jnp.maximum(
            jnp.dot(h, w_ref[...], preferred_element_type=jnp.float32) + b_ref[...],
            0.0)
    x2 = h  # trailing F.relu is a no-op (MLP already ends in ReLU) -> dropped

    # cat([x0, x1, x2], -1) @ Wf  ==  x0@Wf0 + x1@Wf1 + x2@Wf2  (split in the wrapper)
    out = (jnp.dot(x0t_ref[...], wf0_ref[...], preferred_element_type=jnp.float32)
           + jnp.dot(x1t_ref[...], wf1_ref[...], preferred_element_type=jnp.float32)
           + jnp.dot(x2, wf2_ref[...], preferred_element_type=jnp.float32)
           + bf_ref[...])
    out_ref[...] = out


def hybrid_gnn_forward(x, edge_index, edge_attr, params, kernel_size=5,
                       tile_m=256, lane_pad=128):
    """Glue (spline basis + dense aggregation matrices) in JAX; all hot matmuls in Pallas."""
    N, Cin = x.shape
    E, dim = edge_attr.shape
    K = kernel_size ** dim
    Cout = params["w_root"].shape[1]
    Cfin = params["b_final"].shape[-1]
    CP = lane_pad
    assert max(Cin, Cout, Cfin) <= CP

    TILE_M = min(tile_m, _round_up(N, 16))      # 16-aligned for bf16 sublane tiling
    N_pad = _round_up(N, TILE_M)
    n_tiles = N_pad // TILE_M

    src, dst = edge_index[0], edge_index[1]     # PyG convention: messages flow src -> dst

    # ---- open B-spline basis, degree 1 (torch_spline_conv semantics) ----
    v = edge_attr.astype(jnp.float32) * (kernel_size - 1)
    fl = jnp.floor(v)
    fr = v - fl
    fli = fl.astype(jnp.int32)
    bases, idxs = [], []
    for s in range(2 ** dim):
        b = jnp.ones((E,), jnp.float32)
        idx = jnp.zeros((E,), jnp.int32)
        for d in range(dim):
            bit = (s >> d) & 1
            b = b * (fr[:, d] if bit else (1.0 - fr[:, d]))
            kd = jnp.clip(fli[:, d] + bit, 0, kernel_size - 1)
            idx = idx + kd * (kernel_size ** d)
        bases.append(b)
        idxs.append(idx)
    basis = jnp.stack(bases, 1)    # (E, 2**dim)
    widx = jnp.stack(idxs, 1)      # (E, 2**dim)

    # ---- dense, degree-normalized (mean aggr) per-kernel aggregation matrices, bf16 ----
    # Normalization is done in f32 BEFORE the bf16 cast (per review).
    # TODO(synk): for E << N^2, replace dense B / A with CSR-sorted edges +
    #             PrefetchScalarGridSpec-driven gathers/segment-sums inside the kernel.
    dst_rep = jnp.broadcast_to(dst[:, None], widx.shape).reshape(-1)
    src_rep = jnp.broadcast_to(src[:, None], widx.shape).reshape(-1)
    B = jnp.zeros((K, N_pad, N_pad), jnp.float32)
    B = B.at[widx.reshape(-1), dst_rep, src_rep].add(basis.reshape(-1))
    deg = jnp.zeros((N_pad,), jnp.float32).at[dst].add(1.0)
    deg = jnp.maximum(deg, 1.0)                      # zero in-degree -> zero message rows
    B = (B / deg[None, :, None]).astype(jnp.bfloat16)

    # GIN sum-aggregation adjacency with the eps=0 self-term folded in: A_hat = A + I
    A = jnp.zeros((N_pad, N_pad), jnp.float32).at[dst, src].add(1.0)
    A = A.at[jnp.arange(N), jnp.arange(N)].add(1.0)
    A_hat = A.astype(jnp.bfloat16)

    # ---- zero-pad channel dims to CP lanes (identity through Linear + ReLU) ----
    def pad2(w, rows, cols):
        return jnp.zeros((rows, cols), jnp.float32).at[
            :w.shape[0], :w.shape[1]].set(w.astype(jnp.float32))

    x0f = jnp.zeros((N_pad, CP), jnp.float32).at[:N, :Cin].set(x.astype(jnp.float32))
    x0bf = x0f.astype(jnp.bfloat16)

    wsp = jnp.zeros((K, CP, CP), jnp.float32).at[:, :Cin, :Cout].set(
        params["w_spline"].astype(jnp.float32))
    wroot = pad2(params["w_root"], CP, CP)
    bspl = pad2(params["b_spline"], 1, CP)
    wmlp = [pad2(w, CP, CP) for w in params["w_mlp"]]
    bmlp = [pad2(b, 1, CP) for b in params["b_mlp"]]
    wf = params["w_final"]
    wf0 = pad2(wf[:Cin], CP, CP)
    wf1 = pad2(wf[Cin:Cin + Cout], CP, CP)
    wf2 = pad2(wf[Cin + Cout:], CP, CP)
    bfin = pad2(params["b_final"], 1, CP)

    # ---------------- pallas_call 1: SplineConv + ReLU ----------------
    need1 = (N_pad * CP * 2 + 2 * TILE_M * CP * 4 + 2 * TILE_M * N_pad * 2
             + K * CP * CP * 4 + CP * CP * 4 + CP * 4
             + 2 * TILE_M * CP * 4 + TILE_M * CP * 4)
    vmem1 = min(64 << 20, max(16 << 20, 3 * need1 // 2 + (2 << 20)))
    flops1 = (n_tiles * K * (2 * TILE_M * N_pad * CP + 2 * TILE_M * CP * CP)
              + n_tiles * 2 * TILE_M * CP * CP)
    bytes1 = (K * N_pad * N_pad * 2 + N_pad * CP * 6 + K * CP * CP * 4
              + CP * CP * 4 + N_pad * CP * 4)

    x1 = pl.pallas_call(
        spline_kernel,
        out_shape=jax.ShapeDtypeStruct((N_pad, CP), jnp.float32),
        grid_spec=pltpu.PrefetchScalarGridSpec(
            num_scalar_prefetch=0,
            grid=(n_tiles, K),
            in_specs=[
                pl.BlockSpec((N_pad, CP), lambda i, k: (0, 0)),              # x0 bf16 (all src rows, resident)
                pl.BlockSpec((TILE_M, CP), lambda i, k: (i, 0)),             # x0 f32 row tile (root term)
                pl.BlockSpec((None, TILE_M, N_pad), lambda i, k: (k, i, 0)), # B[k] row tile, bf16, streamed
                pl.BlockSpec((K, CP, CP), lambda i, k: (0, 0, 0)),           # spline weights (resident)
                pl.BlockSpec((CP, CP), lambda i, k: (0, 0)),                 # root weight
                pl.BlockSpec((1, CP), lambda i, k: (0, 0)),                  # bias
            ],
            out_specs=pl.BlockSpec((TILE_M, CP), lambda i, k: (i, 0)),
            scratch_shapes=[pltpu.VMEM((TILE_M, CP), jnp.float32)],
        ),
        compiler_params=pltpu.CompilerParams(
            dimension_semantics=("parallel", "arbitrary"),
            vmem_limit_bytes=vmem1),
        cost_estimate=pl.CostEstimate(flops=flops1, transcendentals=0,
                                      bytes_accessed=bytes1),
    )(x0bf, x0f, B, wsp, wroot, bspl)

    # ---------------- pallas_call 2: GINConv(MLP) + final Linear ----------------
    x1bf = x1.astype(jnp.bfloat16)
    need2 = (2 * TILE_M * N_pad * 2 + N_pad * CP * 2 + 4 * TILE_M * CP * 4
             + 12 * CP * CP * 4 + 2 * TILE_M * CP * 4)
    vmem2 = min(64 << 20, max(16 << 20, 3 * need2 // 2 + (2 << 20)))
    flops2 = 2 * N_pad * N_pad * CP + 14 * N_pad * CP * CP
    bytes2 = (N_pad * N_pad * 2 + N_pad * CP * 2 + 2 * N_pad * CP * 4
              + 12 * CP * CP * 4 + N_pad * CP * 4)

    wb = []
    for w, b in zip(wmlp, bmlp):
        wb += [w, b]

    out_pad = pl.pallas_call(
        gin_final_kernel,
        out_shape=jax.ShapeDtypeStruct((N_pad, CP), jnp.float32),
        grid_spec=pltpu.PrefetchScalarGridSpec(
            num_scalar_prefetch=0,
            grid=(n_tiles,),
            in_specs=(
                [pl.BlockSpec((TILE_M, N_pad), lambda i: (i, 0)),   # A_hat row tile (bf16)
                 pl.BlockSpec((N_pad, CP), lambda i: (0, 0)),       # x1 bf16 (all src rows)
                 pl.BlockSpec((TILE_M, CP), lambda i: (i, 0)),      # x0 f32 row tile
                 pl.BlockSpec((TILE_M, CP), lambda i: (i, 0))]      # x1 f32 row tile
                + [pl.BlockSpec((CP, CP), lambda i: (0, 0)),
                   pl.BlockSpec((1, CP), lambda i: (0, 0))] * 4     # MLP weights / biases
                + [pl.BlockSpec((CP, CP), lambda i: (0, 0))] * 3    # split final weight
                + [pl.BlockSpec((1, CP), lambda i: (0, 0))]         # final bias
            ),
            out_specs=pl.BlockSpec((TILE_M, CP), lambda i: (i, 0)),
        ),
        compiler_params=pltpu.CompilerParams(
            dimension_semantics=("parallel",),
            vmem_limit_bytes=vmem2),
        cost_estimate=pl.CostEstimate(flops=flops2, transcendentals=0,
                                      bytes_accessed=bytes2),
    )(A_hat, x1bf, x0f, x1, *wb, wf0, wf1, wf2, bfin)

    # strip row/lane padding
    return out_pad[:N, :Cfin]


if __name__ == "__main__":
    key = jax.random.PRNGKey(0)
    N, E = 32, 96
    Cin, Cout, DIM, KSIZE = 8, 16, 2, 5
    K_total = KSIZE ** DIM

    ks = jax.random.split(key, 16)
    x = jax.random.normal(ks[0], (N, Cin), jnp.float32)
    src = jax.random.randint(ks[1], (E,), 0, N, dtype=jnp.int32)
    dst = jax.random.randint(ks[2], (E,), 0, N, dtype=jnp.int32)
    edge_index = jnp.stack([src, dst], axis=0)                      # (2, E)
    edge_attr = jax.random.uniform(ks[3], (E, DIM), jnp.float32)    # pseudo-coords in [0, 1)

    def u(k, shape, scale=0.1):
        return jax.random.uniform(k, shape, jnp.float32, -scale, scale)

    params = dict(
        w_spline=u(ks[4], (K_total, Cin, Cout)),   # SplineConv kernel weights
        w_root=u(ks[5], (Cin, Cout)),              # SplineConv root (lin) weight
        b_spline=u(ks[6], (1, Cout)),              # SplineConv bias
        w_mlp=[u(ks[7], (Cout, Cout)), u(ks[8], (Cout, Cout)),
               u(ks[9], (Cout, Cout)), u(ks[10], (Cout, Cout))],
        b_mlp=[u(ks[11], (1, Cout)), u(ks[12], (1, Cout)),
               u(ks[13], (1, Cout)), u(ks[14], (1, Cout))],
        w_final=u(ks[15], (Cin + 2 * Cout, Cout)), # cat=True -> in = Cin + num_layers*Cout
        b_final=jnp.zeros((1, Cout), jnp.float32),
    )

    out = hybrid_gnn_forward(x, edge_index, edge_attr, params, kernel_size=KSIZE)
    jax.block_until_ready(out)
    assert out.shape == (N, Cout) and out.dtype == jnp.float32
    print("KERNEL_OK")
</pallas_src>

<mosaic_0001>
module attributes {stable_mosaic.version = 11 : i64} {
  func.func @spline_kernel(%arg0: i32, %arg1: i32, %arg2: memref<32x128xbf16, #tpu.memory_space<vmem>>, %arg3: memref<32x128xf32, #tpu.memory_space<vmem>>, %arg4: memref<1x32x32xbf16, #tpu.memory_space<vmem>>, %arg5: memref<25x128x128xf32, #tpu.memory_space<vmem>>, %arg6: memref<128x128xf32, #tpu.memory_space<vmem>>, %arg7: memref<1x128xf32, #tpu.memory_space<vmem>>, %arg8: memref<32x128xf32, #tpu.memory_space<vmem>>, %arg9: memref<32x128xf32, #tpu.memory_space<vmem>>) attributes {dimension_semantics = [#tpu.dimension_semantics<parallel>, #tpu.dimension_semantics<arbitrary>], iteration_bounds = array<i64: 1, 25>, scalar_prefetch = 0 : i64, scratch_operands = 1 : i64, tpu.core_type = #tpu.core_type<tc>, window_params = [{pipeline_mode = #tpu.pipeline_mode<synchronous>, transform_indices = @transform_0, window_bounds = array<i64: 32, 128>}, {transform_indices = @transform_1, window_bounds = array<i64: 32, 128>}, {transform_indices = @transform_2, window_bounds = array<i64: 1, 32, 32>}, {pipeline_mode = #tpu.pipeline_mode<synchronous>, transform_indices = @transform_3, window_bounds = array<i64: 25, 128, 128>}, {pipeline_mode = #tpu.pipeline_mode<synchronous>, transform_indices = @transform_4, window_bounds = array<i64: 128, 128>}, {pipeline_mode = #tpu.pipeline_mode<synchronous>, transform_indices = @transform_5, window_bounds = array<i64: 1, 128>}, {transform_indices = @transform_6, window_bounds = array<i64: 32, 128>}]} {
    %c0_i32 = arith.constant 0 : i32
    %0 = arith.cmpi eq, %arg1, %c0_i32 : i32
    %1 = arith.extui %0 : i1 to i32
    %c0_i32_0 = arith.constant 0 : i32
    %2 = arith.cmpi ne, %1, %c0_i32_0 : i32
    scf.if %2 {
      %c0_13 = arith.constant 0 : index
      %c0_14 = arith.constant 0 : index
      %17 = vector.load %arg3[%c0_13, %c0_14] : memref<32x128xf32, #tpu.memory_space<vmem>>, vector<32x128xf32>
      %c0_15 = arith.constant 0 : index
      %c0_16 = arith.constant 0 : index
      %18 = vector.load %arg6[%c0_15, %c0_16] : memref<128x128xf32, #tpu.memory_space<vmem>>, vector<128x128xf32>
      %cst_17 = arith.constant dense<0.000000e+00> : vector<32x128xf32>
      %19 = tpu.matmul %17, %18, %cst_17 {dimension_numbers = #tpu.dot_dimension_numbers<[1], [0], [0], [1], [0, 0, 1, 1], [], []>} : vector<32x128xf32>, vector<128x128xf32>, vector<32x128xf32> -> vector<32x128xf32>
      %c0_18 = arith.constant 0 : index
      %c0_19 = arith.constant 0 : index
      %20 = vector.load %arg7[%c0_18, %c0_19] : memref<1x128xf32, #tpu.memory_space<vmem>>, vector<1x128xf32>
      %21 = vector.broadcast %20 : vector<1x128xf32> to vector<32x128xf32>
      %22 = arith.addf %19, %21 : vector<32x128xf32>
      %c0_20 = arith.constant 0 : index
      %c0_21 = arith.constant 0 : index
      %23 = vector.load %arg9[%c0_20, %c0_21] : memref<32x128xf32, #tpu.memory_space<vmem>>, vector<32x128xf32>
      tpu.vector_store %arg9[%c0_20, %c0_21], %22 {strides = array<i32>} : memref<32x128xf32, #tpu.memory_space<vmem>>, vector<32x128xf32>,
    } else {
    }
    %c0 = arith.constant 0 : index
    %c0_1 = arith.constant 0 : index
    %c0_2 = arith.constant 0 : index
    %3 = vector.load %arg4[%c0, %c0_1, %c0_2] : memref<1x32x32xbf16, #tpu.memory_space<vmem>>, vector<1x32x32xbf16>
    %4 = vector.shape_cast %3 : vector<1x32x32xbf16> to vector<32x32xbf16>
    %c0_3 = arith.constant 0 : index
    %c0_4 = arith.constant 0 : index
    %5 = vector.load %arg2[%c0_3, %c0_4] : memref<32x128xbf16, #tpu.memory_space<vmem>>, vector<32x128xbf16>
    %cst = arith.constant dense<0.000000e+00> : vector<32x128xf32>
    %6 = tpu.matmul %4, %5, %cst {dimension_numbers = #tpu.dot_dimension_numbers<[1], [0], [0], [1], [0, 0, 1, 1], [], []>} : vector<32x32xbf16>, vector<32x128xbf16>, vector<32x128xf32> -> vector<32x128xf32>
    %c0_5 = arith.constant 0 : index
    %c0_6 = arith.constant 0 : index
    %7 = vector.load %arg9[%c0_5, %c0_6] : memref<32x128xf32, #tpu.memory_space<vmem>>, vector<32x128xf32>
    %8 = arith.index_cast %arg1 : i32 to index
    %c0_7 = arith.constant 0 : index
    %c0_8 = arith.constant 0 : index
    %9 = vector.load %arg5[%8, %c0_7, %c0_8] : memref<25x128x128xf32, #tpu.memory_space<vmem>>, vector<1x128x128xf32>
    %10 = vector.shape_cast %9 : vector<1x128x128xf32> to vector<128x128xf32>
    %cst_9 = arith.constant dense<0.000000e+00> : vector<32x128xf32>
    %11 = tpu.matmul %6, %10, %cst_9 {dimension_numbers = #tpu.dot_dimension_numbers<[1], [0], [0], [1], [0, 0, 1, 1], [], []>} : vector<32x128xf32>, vector<128x128xf32>, vector<32x128xf32> -> vector<32x128xf32>
    %12 = arith.addf %7, %11 : vector<32x128xf32>
    %c0_10 = arith.constant 0 : index
    %c0_11 = arith.constant 0 : index
    %13 = vector.load %arg9[%c0_10, %c0_11] : memref<32x128xf32, #tpu.memory_space<vmem>>, vector<32x128xf32>
    tpu.vector_store %arg9[%c0_10, %c0_11], %12 {strides = array<i32>} : memref<32x128xf32, #tpu.memory_space<vmem>>, vector<32x128xf32>,
    %c24_i32 = arith.constant 24 : i32
    %14 = arith.cmpi eq, %arg1, %c24_i32 : i32
    %15 = arith.extui %14 : i1 to i32
    %c0_i32_12 = arith.constant 0 : i32
    %16 = arith.cmpi ne, %15, %c0_i32_12 : i32
    scf.if %16 {
      %c0_13 = arith.constant 0 : index
      %c0_14 = arith.constant 0 : index
      %17 = vector.load %arg9[%c0_13, %c0_14] : memref<32x128xf32, #tpu.memory_space<vmem>>, vector<32x128xf32>
      %cst_15 = arith.constant 0.000000e+00 : f32
      %18 = vector.broadcast %cst_15 : f32 to vector<32x128xf32>
      %19 = arith.maximumf %17, %18 : vector<32x128xf32>
      %c0_16 = arith.constant 0 : index
      %c0_17 = arith.constant 0 : index
      %20 = vector.load %arg8[%c0_16, %c0_17] : memref<32x128xf32, #tpu.memory_space<vmem>>, vector<32x128xf32>
      tpu.vector_store %arg8[%c0_16, %c0_17], %19 {strides = array<i32>} : memref<32x128xf32, #tpu.memory_space<vmem>>, vector<32x128xf32>,
    } else {
    }
    return
  }
  func.func @transform_0(%arg0: i32, %arg1: i32) -> (i32, i32) {
    %c0_i32 = arith.constant 0 : i32
    %c0_i32_0 = arith.constant 0 : i32
    %c0_i32_1 = arith.constant 0 : i32
    return %c0_i32, %c0_i32_0 : i32, i32
  }
  func.func @transform_1(%arg0: i32, %arg1: i32) -> (i32, i32) {
    %c0_i32 = arith.constant 0 : i32
    %c0_i32_0 = arith.constant 0 : i32
    return %arg0, %c0_i32 : i32, i32
  }
  func.func @transform_2(%arg0: i32, %arg1: i32) -> (i32, i32, i32) {
    %c0_i32 = arith.constant 0 : i32
    %c0_i32_0 = arith.constant 0 : i32
    return %arg1, %arg0, %c0_i32 : i32, i32, i32
  }
  func.func @transform_3(%arg0: i32, %arg1: i32) -> (i32, i32, i32) {
    %c0_i32 = arith.constant 0 : i32
    %c0_i32_0 = arith.constant 0 : i32
    %c0_i32_1 = arith.constant 0 : i32
    %c0_i32_2 = arith.constant 0 : i32
    return %c0_i32, %c0_i32_0, %c0_i32_1 : i32, i32, i32
  }
  func.func @transform_4(%arg0: i32, %arg1: i32) -> (i32, i32) {
    %c0_i32 = arith.constant 0 : i32
    %c0_i32_0 = arith.constant 0 : i32
    %c0_i32_1 = arith.constant 0 : i32
    return %c0_i32, %c0_i32_0 : i32, i32
  }
  func.func @transform_5(%arg0: i32, %arg1: i32) -> (i32, i32) {
    %c0_i32 = arith.constant 0 : i32
    %c0_i32_0 = arith.constant 0 : i32
    %c0_i32_1 = arith.constant 0 : i32
    return %c0_i32, %c0_i32_0 : i32, i32
  }
  func.func @transform_6(%arg0: i32, %arg1: i32) -> (i32, i32) {
    %c0_i32 = arith.constant 0 : i32
    %c0_i32_0 = arith.constant 0 : i32
    return %arg0, %c0_i32 : i32, i32
  }
}

</mosaic_0001>

<llo_original>
// kernel: tpu_custom_call.1
$region0: #{tpu_custom_call.1}
  #allocation0 [shape = 'u32[]', space=smem, size = 0x4, offset = 0x4, fixed_abs, tag = 'smem constant byte address 0x4 - core index']
  #allocation1 [shape = 'u32[144,128]{1,0:T(1,128)}', space=vmem, size = 0x12000, scoped, tag = 'internal scratch']
  #allocation2 [shape = 'f32[32,128]{1,0:T(8,128)}', space=vmem, size = 0x4000, scoped, tag = 'scratch operand']
  %s0 = inlined_call_operand.hbm [shape: bf16[32,128], index: 0, kind: input, shape index: {}]
  %s1 = inlined_call_operand.hbm [shape: f32[32,128], index: 1, kind: input, shape index: {}]
  %s2 = inlined_call_operand.hbm [shape: bf16[25,32,32], index: 2, kind: input, shape index: {}]
  %s3 = inlined_call_operand.hbm [shape: f32[25,128,128], index: 3, kind: input, shape index: {}]
  %s4 = inlined_call_operand.hbm [shape: f32[128,128], index: 4, kind: input, shape index: {}]
  %s5 = inlined_call_operand.hbm [shape: f32[1,128], index: 5, kind: input, shape index: {}]
  %s6 = inlined_call_operand.hbm [shape: f32[32,128], index: 6, kind: output, shape index: {}]
  %s7 = sld [smem:[#allocation0]]
  $region89: #{tpu_custom_call.1} parent=0
    _
  %s9 = ssub.s32 1, %s7
  %s10 = scalar_select 0, %s9, %s7
  $region1: #{tpu_custom_call.1} parent=0
    #allocation3 [shape = 'u8[8192]{0}', space=vmem, size = 0x2000, scoped, tag = 'input window, operand 0, single buffered']
    #allocation4 [shape = 's32[2]{0}', space=sflag, size = 0x8, scoped, tag = 'scoped memory for tpu_custom_call.1']
    #allocation5 [shape = 's32[2]{0}', space=sflag, size = 0x8, scoped, tag = 'scoped memory for tpu_custom_call.1']
    #allocation6 [shape = 'u8[16384]{0}', space=vmem, size = 0x4000, scoped, tag = 'input window, operand 1, single buffered']
    #allocation7 [shape = 's32[1]{0}', space=sflag, size = 0x4, scoped, tag = 'scoped memory for tpu_custom_call.1']
    #allocation8 [shape = 'u8[16384]{0}', space=vmem, size = 0x4000, scoped, tag = 'input window, operand 2']
    #allocation9 [shape = 'u8[1638400]{0}', space=vmem, size = 0x190000, scoped, tag = 'input window, operand 3, single buffered']
    #allocation10 [shape = 'u8[65536]{0}', space=vmem, size = 0x10000, scoped, tag = 'input window, operand 4, single buffered']
    #allocation11 [shape = 's32[1]{0}', space=sflag, size = 0x4, scoped, tag = 'scoped memory for tpu_custom_call.1']
    #allocation12 [shape = 'u8[512]{0}', space=vmem, size = 0x400, scoped, tag = 'input window, operand 5, single buffered']
    #allocation13 [shape = 'u8[16384]{0}', space=vmem, size = 0x4000, scoped, tag = 'output window, operand 0, single buffered']
    %11 = vsyncpa [#allocation4], 0
    %12 = vsyncpa [#allocation7], 0
    %13 = vsyncpa [#allocation11], 0
    %14 = vsyncpa [#allocation5], 0
    loop: start=0, step=1, limit=27
    $region2: #{tpu_custom_call.1} parent=1 // loop_pre_header
      _
    $region3: #{tpu_custom_call.1} parent=1 // loop_header
      %s16 = sphi 0, %s20
      %p17 = scmp.ge.s32.totalorder %s16, 27
      %s23 = sphi 0, %s35
      %s24 = sphi 0, %s31
      %s25 = sphi 0, %s23
      %s26 = sphi 0, %s24
      %s27 = sphi 0, %s25
      %s28 = sphi 0, %s26
      %s36 = sphi 0, %s36
      %s38 = sphi 0, %s36
      %s39 = sphi 0, %s38
      %s53 = sphi 0, %s39
      %s59 = sphi 0, %s61
      %s62 = sphi 0, %s59
      %s63 = sphi 0, %s62
      %s79 = sphi 0, %s63
      %s87 = sphi 0, %s89
      %s90 = sphi 0, %s87
      %s91 = sphi 0, %s90
      %s107 = sphi 0, %s91
      %s111 = sphi 0, %s111
      %s113 = sphi 0, %s111
      %s114 = sphi 0, %s113
      %s128 = sphi 0, %s114
      %s132 = sphi 0, %s132
      %s134 = sphi 0, %s132
      %s135 = sphi 0, %s134
      %s149 = sphi 0, %s135
      %s153 = sphi 0, %s153
      %s155 = sphi 0, %s153
      %s156 = sphi 0, %s155
      %s170 = sphi 0, %s156
      %s176 = sphi 0, %s178
      %s179 = sphi 0, %s176
      %s180 = sphi 0, %s179
      %s196 = sphi 0, %s180
    $region4: #{tpu_custom_call.1} parent=1 // loop_header_branch
      %19 = sbr.rel (%p17) target = $region8
    $region5: #{tpu_custom_call.1} parent=1 // loop_body
      %s21 = ssub.s32 %s16, 1
      %s22 = ssub.s32 %s16, 2
      %s29 = sadd.s32 1, %s24
      %p30 = scmp.ge.s32.totalorder %s29, 25
      %s31 = scalar_select %p30, 0, %s29
      %s32 = sadd.s32 1, %s23
      %s33 = scalar_select %p30, %s32, %s23
      %p34 = scmp.ge.s32.totalorder %s33, 1
      %s35 = scalar_select %p34, 0, %s33
      %s37 = sadd.s32 %s36, 1
      %p40 = scmp.eq.s32.totalorder %s16, 24
      %p41 = scmp.ne.s32.totalorder %s36, %s38
      %p42 = scmp.eq.s32.totalorder %s16, 0
      %p43 = por %p41, %p42
      %p44 = scmp.ne.s32.totalorder %s36, %s38
      %p45 = scmp.eq.s32.totalorder %s21, 24
      %p46 = por %p44, %p45
      %p47 = scmp.ne.s32.totalorder %s38, %s39
      %p48 = scmp.eq.s32.totalorder %s21, 0
      %p49 = por %p47, %p48
      %p50 = scmp.ne.s32.totalorder %s38, %s39
      %p51 = scmp.eq.s32.totalorder %s22, 24
      %p52 = por %p50, %p51
      %p54 = scmp.ne.s32.totalorder %s39, %s53
      %p55 = scmp.eq.s32.totalorder %s22, 0
      %p56 = por %p54, %p55
      %s57 = ssub.s32 %s23, %s35
      %p58 = scmp.eq.s32.totalorder %s57, 0
      %s60 = sadd.s32 %s59, 1
      %s61 = scalar_select %p58, %s59, %s60
      %p64 = pneg %p58
      %p65 = scmp.eq.s32.totalorder %s16, 24
      %p66 = por %p64, %p65
      %p67 = scmp.ne.s32.totalorder %s59, %s62
      %p68 = scmp.eq.s32.totalorder %s16, 0
      %p69 = por %p67, %p68
      %p70 = scmp.ne.s32.totalorder %s59, %s62
      %p71 = scmp.eq.s32.totalorder %s21, 24
      %p72 = por %p70, %p71
      %p73 = scmp.ne.s32.totalorder %s62, %s63
      %p74 = scmp.eq.s32.totalorder %s21, 0
      %p75 = por %p73, %p74
      %p76 = scmp.ne.s32.totalorder %s62, %s63
      %p77 = scmp.eq.s32.totalorder %s22, 24
      %p78 = por %p76, %p77
      %p80 = scmp.ne.s32.totalorder %s63, %s79
      %p81 = scmp.eq.s32.totalorder %s22, 0
      %p82 = por %p80, %p81
      %s83 = ssub.s32 %s24, %s31
      %s84 = ssub.s32 %s23, %s35
      %s85 = sor.u32 %s83, %s84
      %p86 = scmp.eq.s32.totalorder %s85, 0
      %s88 = sadd.s32 %s87, 1
      %s89 = scalar_select %p86, %s87, %s88
      %p92 = pneg %p86
      %p93 = scmp.eq.s32.totalorder %s16, 24
      %p94 = por %p92, %p93
      %p95 = scmp.ne.s32.totalorder %s87, %s90
      %p96 = scmp.eq.s32.totalorder %s16, 0
      %p97 = por %p95, %p96
      %p98 = scmp.ne.s32.totalorder %s87, %s90
      %p99 = scmp.eq.s32.totalorder %s21, 24
      %p100 = por %p98, %p99
      %p101 = scmp.ne.s32.totalorder %s90, %s91
      %p102 = scmp.eq.s32.totalorder %s21, 0
      %p103 = por %p101, %p102
      %p104 = scmp.ne.s32.totalorder %s90, %s91
      %p105 = scmp.eq.s32.totalorder %s22, 24
      %p106 = por %p104, %p105
      %p108 = scmp.ne.s32.totalorder %s91, %s107
      %p109 = scmp.eq.s32.totalorder %s22, 0
      %p110 = por %p108, %p109
      %s112 = sadd.s32 %s111, 1
      %p115 = scmp.eq.s32.totalorder %s16, 24
      %p116 = scmp.ne.s32.totalorder %s111, %s113
      %p117 = scmp.eq.s32.totalorder %s16, 0
      %p118 = por %p116, %p117
      %p119 = scmp.ne.s32.totalorder %s111, %s113
      %p120 = scmp.eq.s32.totalorder %s21, 24
      %p121 = por %p119, %p120
      %p122 = scmp.ne.s32.totalorder %s113, %s114
      %p123 = scmp.eq.s32.totalorder %s21, 0
      %p124 = por %p122, %p123
      %p125 = scmp.ne.s32.totalorder %s113, %s114
      %p126 = scmp.eq.s32.totalorder %s22, 24
      %p127 = por %p125, %p126
      %p129 = scmp.ne.s32.totalorder %s114, %s128
      %p130 = scmp.eq.s32.totalorder %s22, 0
      %p131 = por %p129, %p130
      %s133 = sadd.s32 %s132, 1
      %p136 = scmp.eq.s32.totalorder %s16, 24
      %p137 = scmp.ne.s32.totalorder %s132, %s134
      %p138 = scmp.eq.s32.totalorder %s16, 0
      %p139 = por %p137, %p138
      %p140 = scmp.ne.s32.totalorder %s132, %s134
      %p141 = scmp.eq.s32.totalorder %s21, 24
      %p142 = por %p140, %p141
      %p143 = scmp.ne.s32.totalorder %s134, %s135
      %p144 = scmp.eq.s32.totalorder %s21, 0
      %p145 = por %p143, %p144
      %p146 = scmp.ne.s32.totalorder %s134, %s135
      %p147 = scmp.eq.s32.totalorder %s22, 24
      %p148 = por %p146, %p147
      %p150 = scmp.ne.s32.totalorder %s135, %s149
      %p151 = scmp.eq.s32.totalorder %s22, 0
      %p152 = por %p150, %p151
      %s154 = sadd.s32 %s153, 1
      %p157 = scmp.eq.s32.totalorder %s16, 24
      %p158 = scmp.ne.s32.totalorder %s153, %s155
      %p159 = scmp.eq.s32.totalorder %s16, 0
      %p160 = por %p158, %p159
      %p161 = scmp.ne.s32.totalorder %s153, %s155
      %p162 = scmp.eq.s32.totalorder %s21, 24
      %p163 = por %p161, %p162
      %p164 = scmp.ne.s32.totalorder %s155, %s156
      %p165 = scmp.eq.s32.totalorder %s21, 0
      %p166 = por %p164, %p165
      %p167 = scmp.ne.s32.totalorder %s155, %s156
      %p168 = scmp.eq.s32.totalorder %s22, 24
      %p169 = por %p167, %p168
      %p171 = scmp.ne.s32.totalorder %s156, %s170
      %p172 = scmp.eq.s32.totalorder %s22, 0
      %p173 = por %p171, %p172
      %s174 = ssub.s32 %s23, %s35
      %p175 = scmp.eq.s32.totalorder %s174, 0
      %s177 = sadd.s32 %s176, 1
      %s178 = scalar_select %p175, %s176, %s177
      %p181 = pneg %p175
      %p182 = scmp.eq.s32.totalorder %s16, 24
      %p183 = por %p181, %p182
      %p184 = scmp.ne.s32.totalorder %s176, %s179
      %p185 = scmp.eq.s32.totalorder %s16, 0
      %p186 = por %p184, %p185
      %p187 = scmp.ne.s32.totalorder %s176, %s179
      %p188 = scmp.eq.s32.totalorder %s21, 24
      %p189 = por %p187, %p188
      %p190 = scmp.ne.s32.totalorder %s179, %s180
      %p191 = scmp.eq.s32.totalorder %s21, 0
      %p192 = por %p190, %p191
      %p193 = scmp.ne.s32.totalorder %s179, %s180
      %p194 = scmp.eq.s32.totalorder %s22, 24
      %p195 = por %p193, %p194
      %p197 = scmp.ne.s32.totalorder %s180, %s196
      %p198 = scmp.eq.s32.totalorder %s22, 0
      %p199 = por %p197, %p198
      %p200 = scmp.le.s32.totalorder 1, %s16
      %p201 = scmp.lt.s32.totalorder %s16, 26
      %p202 = pnand %p200, %p201
      %p203 = pneg %p202
      // Predicated region
      $region9: #{tpu_custom_call.1} parent=5 // pred_check
        _
      $region10: #{tpu_custom_call.1} parent=5 // pred_check_branch
        %205 = sbr.rel (%p202) target = $region12
      $region11: #{tpu_custom_call.1} parent=5 // pred_region
        %s206 = ssub.s32 %s16, 1
        // Predicated region
        $region13: #{tpu_custom_call.1} parent=11 // pred_check
          %p207 = pneg %p49
        $region14: #{tpu_custom_call.1} parent=11 // pred_check_branch
          %209 = sbr.rel (%p207) target = $region16
        $region15: #{tpu_custom_call.1} parent=11 // pred_region
          %s211 = ssub.s32 256, 256
          %212 = vsyncadd [#allocation4], %s211
          %s213 = sshll.u32 [#allocation3], 4
          %s214 = int_to_ptr.vmem [resolvable:$true] %s213
          %219 = dma.hbm_to_vmem [thread:$0]  %s0, 256, %s214, [#allocation4], 64, 64, 4
        $region16: #{tpu_custom_call.1} parent=11 // pred_fallthru
          _
        // Predicated region
        $region17: #{tpu_custom_call.1} parent=11 // pred_check
          %p220 = pneg %p75
        $region18: #{tpu_custom_call.1} parent=11 // pred_check_branch
          %222 = sbr.rel (%p220) target = $region20
        $region19: #{tpu_custom_call.1} parent=11 // pred_region
          %s223 = smul.u32 4, %s25
          %s225 = ssub.s32 512, 512
          %226 = vsyncadd [#allocation7], %s225
          %s227 = smul.addr %s223, 128
          %s228 = scalar_lea.hbm %s1, %s227
          %s229 = sshll.u32 [#allocation6], 4
          %s230 = int_to_ptr.vmem [resolvable:$true] %s229
          %235 = dma.hbm_to_vmem [thread:$0]  %s228, 512, %s230, [#allocation7], 128, 128, 8
        $region20: #{tpu_custom_call.1} parent=11 // pred_fallthru
          _
        // Predicated region
        $region21: #{tpu_custom_call.1} parent=11 // pred_check
          %p236 = pneg %p124
        $region22: #{tpu_custom_call.1} parent=11 // pred_check_branch
          %238 = sbr.rel (%p236) target = $region24
        $region23: #{tpu_custom_call.1} parent=11 // pred_region
          %s240 = ssub.s32 51200, 51200
          %241 = vsyncadd [#allocation7], %s240
          %s242 = sshll.u32 [#allocation9], 4
          %s243 = int_to_ptr.vmem [resolvable:$true] %s242
          %248 = dma.hbm_to_vmem [thread:$0]  %s3, 51200, %s243, [#allocation7], 128, 128, 8
        $region24: #{tpu_custom_call.1} parent=11 // pred_fallthru
          _
        // Predicated region
        $region25: #{tpu_custom_call.1} parent=11 // pred_check
          %p249 = pneg %p145
        $region26: #{tpu_custom_call.1} parent=11 // pred_check_branch
          %251 = sbr.rel (%p249) target = $region28
        $region27: #{tpu_custom_call.1} parent=11 // pred_region
          %s253 = ssub.s32 2048, 2048
          %254 = vsyncadd [#allocation11], %s253
          %s255 = sshll.u32 [#allocation10], 4
          %s256 = int_to_ptr.vmem [resolvable:$true] %s255
          %261 = dma.hbm_to_vmem [thread:$0]  %s4, 2048, %s256, [#allocation11], 128, 128, 8
        $region28: #{tpu_custom_call.1} parent=11 // pred_fallthru
          _
        // Predicated region
        $region29: #{tpu_custom_call.1} parent=11 // pred_check
          %p262 = pneg %p166
        $region30: #{tpu_custom_call.1} parent=11 // pred_check_branch
          %264 = sbr.rel (%p262) target = $region32
        $region31: #{tpu_custom_call.1} parent=11 // pred_region
          %s266 = ssub.s32 16, 16
          %267 = vsyncadd [#allocation11], %s266
          %s269 = sshll.u32 [#allocation12], 4
          %s270 = int_to_ptr.vmem [resolvable:$true] %s269
          %272 = dma.hbm_to_vmem [thread:$0]  %s5, 16, %s270, [#allocation11]
        $region32: #{tpu_custom_call.1} parent=11 // pred_fallthru
          _
      $region12: #{tpu_custom_call.1} parent=5 // pred_fallthru
        _
      %p273 = scmp.lt.s32.totalorder %s16, 25
      // Predicated region
      $region33: #{tpu_custom_call.1} parent=5 // pred_check
        %p274 = pneg %p273
      $region34: #{tpu_custom_call.1} parent=5 // pred_check_branch
        %276 = sbr.rel (%p274) target = $region36
      $region35: #{tpu_custom_call.1} parent=5 // pred_region
        // Predicated region
        $region37: #{tpu_custom_call.1} parent=35 // pred_check
          %p277 = pneg %p97
        $region38: #{tpu_custom_call.1} parent=35 // pred_check_branch
          %279 = sbr.rel (%p277) target = $region40
        $region39: #{tpu_custom_call.1} parent=35 // pred_region
          %s280 = sand.u32 %s16, 1
          %s281 = scalar_lea.sflag [#allocation4], %s280
          %s282 = sand.u32 %s87, 1
          %s283 = smul.addr %s282, 16
          %s284 = scalar_lea.vmem [#allocation8], %s283
          %s285 = smul.u32 4, %s23
          %s287 = ssub.s32 256, 256
          %288 = vsyncadd %s281, %s287
          %s289 = smul.addr %s24, 4
          %s290 = sadd.s32 %s285, %s289
          %s291 = smul.addr %s290, 64
          %s292 = scalar_lea.hbm %s2, %s291
          %s293 = sshll.u32 %s284, 4
          %s294 = int_to_ptr.vmem [resolvable:$true] %s293
          %299 = dma.hbm_to_vmem [thread:$0]  %s292, 256, %s294, %s281, 64, 64, 4
        $region40: #{tpu_custom_call.1} parent=35 // pred_fallthru
          _
      $region36: #{tpu_custom_call.1} parent=5 // pred_fallthru
        _
      %p300 = scmp.le.s32.totalorder 1, %s16
      %p301 = scmp.lt.s32.totalorder %s16, 26
      %p302 = pnand %p300, %p301
      %p303 = pneg %p302
      // Predicated region
      $region41: #{tpu_custom_call.1} parent=5 // pred_check
        _
      $region42: #{tpu_custom_call.1} parent=5 // pred_check_branch
        %305 = sbr.rel (%p302) target = $region44
      $region43: #{tpu_custom_call.1} parent=5 // pred_region
        %s306 = ssub.s32 %s16, 1
        // Predicated region
        $region45: #{tpu_custom_call.1} parent=43 // pred_check
          %p307 = pneg %p49
        $region46: #{tpu_custom_call.1} parent=43 // pred_check_branch
          %309 = sbr.rel (%p307) target = $region48
        $region47: #{tpu_custom_call.1} parent=43 // pred_region
          %310 = dma.done [#allocation4], 256
        $region48: #{tpu_custom_call.1} parent=43 // pred_fallthru
          _
        // Predicated region
        $region49: #{tpu_custom_call.1} parent=43 // pred_check
          %p311 = pneg %p75
        $region50: #{tpu_custom_call.1} parent=43 // pred_check_branch
          %313 = sbr.rel (%p311) target = $region52
        $region51: #{tpu_custom_call.1} parent=43 // pred_region
          %314 = dma.done [#allocation7], 512
        $region52: #{tpu_custom_call.1} parent=43 // pred_fallthru
          _
        %s315 = sand.u32 %s21, 1
        %s316 = scalar_lea.sflag [#allocation4], %s315
        %s317 = sand.u32 %s90, 1
        %s318 = smul.addr %s317, 16
        %s319 = scalar_lea.vmem [#allocation8], %s318
        // Predicated region
        $region53: #{tpu_custom_call.1} parent=43 // pred_check
          %p320 = pneg %p103
        $region54: #{tpu_custom_call.1} parent=43 // pred_check_branch
          %322 = sbr.rel (%p320) target = $region56
        $region55: #{tpu_custom_call.1} parent=43 // pred_region
          %323 = dma.done %s316, 256
        $region56: #{tpu_custom_call.1} parent=43 // pred_fallthru
          _
        // Predicated region
        $region57: #{tpu_custom_call.1} parent=43 // pred_check
          %p324 = pneg %p124
        $region58: #{tpu_custom_call.1} parent=43 // pred_check_branch
          %326 = sbr.rel (%p324) target = $region60
        $region59: #{tpu_custom_call.1} parent=43 // pred_region
          %327 = dma.done [#allocation7], 51200
        $region60: #{tpu_custom_call.1} parent=43 // pred_fallthru
          _
        // Predicated region
        $region61: #{tpu_custom_call.1} parent=43 // pred_check
          %p328 = pneg %p145
        $region62: #{tpu_custom_call.1} parent=43 // pred_check_branch
          %330 = sbr.rel (%p328) target = $region64
        $region63: #{tpu_custom_call.1} parent=43 // pred_region
          %331 = dma.done [#allocation11], 2048
        $region64: #{tpu_custom_call.1} parent=43 // pred_fallthru
          _
        // Predicated region
        $region65: #{tpu_custom_call.1} parent=43 // pred_check
          %p332 = pneg %p166
        $region66: #{tpu_custom_call.1} parent=43 // pred_check_branch
          %334 = sbr.rel (%p332) target = $region68
        $region67: #{tpu_custom_call.1} parent=43 // pred_region
          %335 = dma.done [#allocation11], 16
        $region68: #{tpu_custom_call.1} parent=43 // pred_fallthru
          _
        %p336 = pneg %p49
        %p337 = pneg %p46
        %p338 = pneg %p75
        %p339 = pneg %p72
        %s340 = sand.u32 %s21, 1
        %s341 = scalar_lea.sflag [#allocation4], %s340
        %s342 = sand.u32 %s90, 1
        %s343 = smul.addr %s342, 16
        %s344 = scalar_lea.vmem [#allocation8], %s343
        %p345 = pneg %p103
        %p346 = pneg %p100
        %p347 = pneg %p124
        %p348 = pneg %p121
        %p349 = pneg %p145
        %p350 = pneg %p142
        %p351 = pneg %p166
        %p352 = pneg %p163
        %p353 = pneg %p192
        %p354 = pneg %p189
        %s355 = smul.u32 4, %s25
        %s356 = smul.u32 4, %s25
        %s357 = smul.u32 4, %s25
        %p359 = scmp.eq.s32.totalorder %s26, 0
        // Predicated region
        $region69: #{tpu_custom_call.1} parent=43 // pred_check
          %p360 = pneg %p359
        $region70: #{tpu_custom_call.1} parent=43 // pred_check_branch
          %362 = sbr.rel (%p360) target = $region72
        $region71: #{tpu_custom_call.1} parent=43 // pred_region
          %v363 = vld [vmem:[#allocation6] sm:$0xff]
          %v364 = vld [vmem:[#allocation6 + $0x8] sm:$0xff]
          %v365 = vld [vmem:[#allocation6 + $0x10] sm:$0xff]
          %v366 = vld [vmem:[#allocation6 + $0x18] sm:$0xff]
          %v367 = vld [vmem:[#allocation10] sm:$0xff]
          %v368 = vld [vmem:[#allocation10 + $0x8] sm:$0xff]
          %v369 = vld [vmem:[#allocation10 + $0x10] sm:$0xff]
          %v370 = vld [vmem:[#allocation10 + $0x18] sm:$0xff]
          %v371 = vld [vmem:[#allocation10 + $0x20] sm:$0xff]
          %v372 = vld [vmem:[#allocation10 + $0x28] sm:$0xff]
          %v373 = vld [vmem:[#allocation10 + $0x30] sm:$0xff]
          %v374 = vld [vmem:[#allocation10 + $0x38] sm:$0xff]
          %v375 = vld [vmem:[#allocation10 + $0x40] sm:$0xff]
          %v376 = vld [vmem:[#allocation10 + $0x48] sm:$0xff]
          %v377 = vld [vmem:[#allocation10 + $0x50] sm:$0xff]
          %v378 = vld [vmem:[#allocation10 + $0x58] sm:$0xff]
          %v379 = vld [vmem:[#allocation10 + $0x60] sm:$0xff]
          %v380 = vld [vmem:[#allocation10 + $0x68] sm:$0xff]
          %v381 = vld [vmem:[#allocation10 + $0x70] sm:$0xff]
          %v382 = vld [vmem:[#allocation10 + $0x78] sm:$0xff]
          %v383 = vld [vmem:[#allocation12] sm:$0x1]
          %v385 = vlaneseq
          %v386 = vshrl.u32 %v385, 7
          %v387 = vsub.s32 0, %v386
          %v388 = vrot.slane %v383, %v387
          %390 = vmatprep.subr.mxu0 0.0
          %391 = vmatpush1.msra.mxu0 %v367
          %392 = vmatprep.subr.mxu0 0.0
          %393 = vmatpush1.msra.mxu0 %v368
          %394 = vmatprep.subr.mxu0 0.0
          %395 = vmatpush1.msra.mxu0 %v369
          %396 = vmatprep.subr.mxu0 0.0
          %397 = vmatpush1.msra.mxu0 %v370
          %398 = vmatprep.subr.mxu0 0.0
          %399 = vmatpush1.msra.mxu0 %v371
          %400 = vmatprep.subr.mxu0 0.0
          %401 = vmatpush1.msra.mxu0 %v372
          %402 = vmatprep.subr.mxu0 0.0
          %403 = vmatpush1.msra.mxu0 %v373
          %404 = vmatprep.subr.mxu0 0.0
          %405 = vmatpush1.msra.mxu0 %v374
          %406 = vmatprep.subr.mxu0 0.0
          %407 = vmatpush1.msra.mxu0 %v375
          %408 = vmatprep.subr.mxu0 0.0
          %409 = vmatpush1.msra.mxu0 %v376
          %410 = vmatprep.subr.mxu0 0.0
          %411 = vmatpush1.msra.mxu0 %v377
          %412 = vmatprep.subr.mxu0 0.0
          %413 = vmatpush1.msra.mxu0 %v378
          %414 = vmatprep.subr.mxu0 0.0
          %415 = vmatpush1.msra.mxu0 %v379
          %416 = vmatprep.subr.mxu0 0.0
          %417 = vmatpush1.msra.mxu0 %v380
          %418 = vmatprep.subr.mxu0 0.0
          %419 = vmatpush1.msra.mxu0 %v381
          %420 = vmatprep.subr.mxu0 0.0
          %421 = vmatpush1.msra.mxu0 %v382
          %422 = vmatprep.subr.mxu0 0.0
          %423 = vmatpush1.msra.mxu0 0.0
          %424 = vmatprep.subr.mxu0 0.0
          %425 = vmatpush1.msra.mxu0 0.0
          %426 = vmatprep.subr.mxu0 0.0
          %427 = vmatpush1.msra.mxu0 0.0
          %428 = vmatprep.subr.mxu0 0.0
          %429 = vmatpush1.msra.mxu0 0.0
          %430 = vmatprep.subr.mxu0 0.0
          %431 = vmatpush1.msra.mxu0 0.0
          %432 = vmatprep.subr.mxu0 0.0
          %433 = vmatpush1.msra.mxu0 0.0
          %434 = vmatprep.subr.mxu0 0.0
          %435 = vmatpush1.msra.mxu0 0.0
          %436 = vmatprep.subr.mxu0 0.0
          %437 = vmatpush1.msra.mxu0 0.0
          %438 = vmatprep.subr.mxu0 0.0
          %439 = vmatpush1.msra.mxu0 0.0
          %440 = vmatprep.subr.mxu0 0.0
          %441 = vmatpush1.msra.mxu0 0.0
          %442 = vmatprep.subr.mxu0 0.0
          %443 = vmatpush1.msra.mxu0 0.0
          %444 = vmatprep.subr.mxu0 0.0
          %445 = vmatpush1.msra.mxu0 0.0
          %446 = vmatprep.subr.mxu0 0.0
          %447 = vmatpush1.msra.mxu0 0.0
          %448 = vmatprep.subr.mxu0 0.0
          %449 = vmatpush1.msra.mxu0 0.0
          %450 = vmatprep.subr.mxu0 0.0
          %451 = vmatpush1.msra.mxu0 0.0
          %452 = vmatprep.subr.mxu0 0.0
          %453 = vmatpush1.msra.mxu0 0.0
          %454 = vmatprep.mubr.f32.mxu0 0.0
          %455 = vmatmul.mubr.f32.gmra.mrb[0].mxu0 %v363
          %v456 = vpop.f32.mrb[0].mxu0
          %v457 = vadd.f32 %v388, %v456
          %v458 = vpop.f32.mrb[0].mxu0
          %459 = vmatprep.mubr.f32.mxu0 0.0
          %460 = vmatmul.mubr.f32.gmra.mrb[0].mxu0 %v364
          %v461 = vpop.f32.mrb[0].mxu0
          %v462 = vadd.f32 %v388, %v461
          %v463 = vpop.f32.mrb[0].mxu0
          %464 = vmatprep.mubr.f32.mxu0 0.0
          %465 = vmatmul.mubr.f32.gmra.mrb[0].mxu0 %v365
          %v466 = vpop.f32.mrb[0].mxu0
          %v467 = vadd.f32 %v388, %v466
          %v468 = vpop.f32.mrb[0].mxu0
          %469 = vmatprep.mubr.f32.mxu0 0.0
          %470 = vmatmul.mubr.f32.gmra.mrb[0].mxu0 %v366
          %v471 = vpop.f32.mrb[0].mxu0
          %v472 = vadd.f32 %v388, %v471
          %v473 = vpop.f32.mrb[0].mxu0
          %474 = vdwg.mxu0
          %475 = vst [vmem:[#allocation2] sm:$0xff] %v457
          %476 = vst [vmem:[#allocation2 + $0x8] sm:$0xff] %v462
          %477 = vst [vmem:[#allocation2 + $0x10] sm:$0xff] %v467
          %478 = vst [vmem:[#allocation2 + $0x18] sm:$0xff] %v472
        $region72: #{tpu_custom_call.1} parent=43 // pred_fallthru
          _
        %v479 = vld [vmem:[%s319] sm:$0xf]
        %v480 = vld [vmem:[%s319 + $0x4] sm:$0xf]
        %v481 = vld [vmem:[%s319 + $0x8] sm:$0xf]
        %v482 = vld [vmem:[%s319 + $0xc] sm:$0xf]
        %v483 = vld [vmem:[#allocation3] sm:$0xf]
        %v484 = vld [vmem:[#allocation3 + $0x4] sm:$0xf]
        %v485 = vld [vmem:[#allocation3 + $0x8] sm:$0xf]
        %v486 = vld [vmem:[#allocation3 + $0xc] sm:$0xf]
        %v491 = vunpack.c.l.b16 %v479
        %v492 = vunpack.c.l.b16 %v480
        %v493 = vunpack.c.l.b16 %v481
        %v494 = vunpack.c.l.b16 %v482
        %v495 = vpack.c.b16 %v492, %v491
        %v496 = vpack.c.b16 %v494, %v493
        %v501 = vunpack.c.l.b16 %v483
        %v502 = vunpack.c.l.b16 %v484
        %v503 = vunpack.c.l.b16 %v485
        %v504 = vunpack.c.l.b16 %v486
        %v505 = vpack.c.b16 %v502, %v501
        %v506 = vpack.c.b16 %v504, %v503
        %vm509 = vcmask 261120
        %v511 = vsel %vm509, %v495, 0
        %v514 = vsel %vm509, %v496, 0
        %516 = vmatprep.subr.bf16.mxu0 0
        %517 = vmatpush1.bf16.msra.mxu0 %v505
        %518 = vmatprep.subr.bf16.mxu0 0
        %519 = vmatpush1.bf16.msra.mxu0 %v506
        %520 = vmatprep.subr.bf16.mxu0 0
        %521 = vmatpush1.bf16.msra.mxu0 0
        %522 = vmatprep.subr.bf16.mxu0 0
        %523 = vmatpush1.bf16.msra.mxu0 0
        %524 = vmatprep.subr.bf16.mxu0 0
        %525 = vmatpush1.bf16.msra.mxu0 0
        %526 = vmatprep.subr.bf16.mxu0 0
        %527 = vmatpush1.bf16.msra.mxu0 0
        %528 = vmatprep.subr.bf16.mxu0 0
        %529 = vmatpush1.bf16.msra.mxu0 0
        %530 = vmatprep.subr.bf16.mxu0 0
        %531 = vmatpush1.bf16.msra.mxu0 0
        %532 = vmatprep.subr.bf16.mxu0 0
        %533 = vmatpush1.bf16.msra.mxu0 0
        %534 = vmatprep.subr.bf16.mxu0 0
        %535 = vmatpush1.bf16.msra.mxu0 0
        %536 = vmatprep.subr.bf16.mxu0 0
        %537 = vmatpush1.bf16.msra.mxu0 0
        %538 = vmatprep.subr.bf16.mxu0 0
        %539 = vmatpush1.bf16.msra.mxu0 0
        %540 = vmatprep.subr.bf16.mxu0 0
        %541 = vmatpush1.bf16.msra.mxu0 0
        %542 = vmatprep.subr.bf16.mxu0 0
        %543 = vmatpush1.bf16.msra.mxu0 0
        %544 = vmatprep.subr.bf16.mxu0 0
        %545 = vmatpush1.bf16.msra.mxu0 0
        %546 = vmatprep.subr.bf16.mxu0 0
        %547 = vmatpush1.bf16.msra.mxu0 0
        %548 = vmatprep.mubr.bf16.mxu0 0
        %549 = vmatmul.mubr.bf16.gmra.mrb[0].mxu0 %v511
        %v550 = vpop.f32.mrb[0].mxu0
        %v551 = vadd.f32 0.0, %v550
        %v552 = vpop.f32.mrb[0].mxu0
        %v553 = vpop.f32.mrb[0].mxu0
        %v554 = vadd.f32 0.0, %v553
        %v555 = vpop.f32.mrb[0].mxu0
        %556 = vmatprep.mubr.bf16.mxu0 0
        %557 = vmatmul.mubr.bf16.gmra.mrb[0].mxu0 %v514
        %v558 = vpop.f32.mrb[0].mxu0
        %v559 = vadd.f32 0.0, %v558
        %v560 = vpop.f32.mrb[0].mxu0
        %v561 = vpop.f32.mrb[0].mxu0
        %v562 = vadd.f32 0.0, %v561
        %v563 = vpop.f32.mrb[0].mxu0
        %564 = vdwg.mxu0
        %v565 = vld [vmem:[#allocation2] sm:$0xff]
        %v566 = vld [vmem:[#allocation2 + $0x8] sm:$0xff]
        %v567 = vld [vmem:[#allocation2 + $0x10] sm:$0xff]
        %v568 = vld [vmem:[#allocation2 + $0x18] sm:$0xff]
        %s569 = smul.u32 %s26, 128
        %s570 = scalar_lea.vmem [#allocation9], %s569
        %v571 = vld [vmem:[%s570] sm:$0xff]
        %v572 = vld [vmem:[%s570 + $0x8] sm:$0xff]
        %v573 = vld [vmem:[%s570 + $0x10] sm:$0xff]
        %v574 = vld [vmem:[%s570 + $0x18] sm:$0xff]
        %v575 = vld [vmem:[%s570 + $0x20] sm:$0xff]
        %v576 = vld [vmem:[%s570 + $0x28] sm:$0xff]
        %v577 = vld [vmem:[%s570 + $0x30] sm:$0xff]
        %v578 = vld [vmem:[%s570 + $0x38] sm:$0xff]
        %v579 = vld [vmem:[%s570 + $0x40] sm:$0xff]
        %v580 = vld [vmem:[%s570 + $0x48] sm:$0xff]
        %v581 = vld [vmem:[%s570 + $0x50] sm:$0xff]
        %v582 = vld [vmem:[%s570 + $0x58] sm:$0xff]
        %v583 = vld [vmem:[%s570 + $0x60] sm:$0xff]
        %v584 = vld [vmem:[%s570 + $0x68] sm:$0xff]
        %v585 = vld [vmem:[%s570 + $0x70] sm:$0xff]
        %v586 = vld [vmem:[%s570 + $0x78] sm:$0xff]
        %587 = vmatprep.subr.mxu0 0.0
        %588 = vmatpush1.msra.mxu0 %v571
        %589 = vmatprep.subr.mxu0 0.0
        %590 = vmatpush1.msra.mxu0 %v572
        %591 = vmatprep.subr.mxu0 0.0
        %592 = vmatpush1.msra.mxu0 %v573
        %593 = vmatprep.subr.mxu0 0.0
        %594 = vmatpush1.msra.mxu0 %v574
        %595 = vmatprep.subr.mxu0 0.0
        %596 = vmatpush1.msra.mxu0 %v575
        %597 = vmatprep.subr.mxu0 0.0
        %598 = vmatpush1.msra.mxu0 %v576
        %599 = vmatprep.subr.mxu0 0.0
        %600 = vmatpush1.msra.mxu0 %v577
        %601 = vmatprep.subr.mxu0 0.0
        %602 = vmatpush1.msra.mxu0 %v578
        %603 = vmatprep.subr.mxu0 0.0
        %604 = vmatpush1.msra.mxu0 %v579
        %605 = vmatprep.subr.mxu0 0.0
        %606 = vmatpush1.msra.mxu0 %v580
        %607 = vmatprep.subr.mxu0 0.0
        %608 = vmatpush1.msra.mxu0 %v581
        %609 = vmatprep.subr.mxu0 0.0
        %610 = vmatpush1.msra.mxu0 %v582
        %611 = vmatprep.subr.mxu0 0.0
        %612 = vmatpush1.msra.mxu0 %v583
        %613 = vmatprep.subr.mxu0 0.0
        %614 = vmatpush1.msra.mxu0 %v584
        %615 = vmatprep.subr.mxu0 0.0
        %616 = vmatpush1.msra.mxu0 %v585
        %617 = vmatprep.subr.mxu0 0.0
        %618 = vmatpush1.msra.mxu0 %v586
        %619 = vmatprep.subr.mxu0 0.0
        %620 = vmatpush1.msra.mxu0 0.0
        %621 = vmatprep.subr.mxu0 0.0
        %622 = vmatpush1.msra.mxu0 0.0
        %623 = vmatprep.subr.mxu0 0.0
        %624 = vmatpush1.msra.mxu0 0.0
        %625 = vmatprep.subr.mxu0 0.0
        %626 = vmatpush1.msra.mxu0 0.0
        %627 = vmatprep.subr.mxu0 0.0
        %628 = vmatpush1.msra.mxu0 0.0
        %629 = vmatprep.subr.mxu0 0.0
        %630 = vmatpush1.msra.mxu0 0.0
        %631 = vmatprep.subr.mxu0 0.0
        %632 = vmatpush1.msra.mxu0 0.0
        %633 = vmatprep.subr.mxu0 0.0
        %634 = vmatpush1.msra.mxu0 0.0
        %635 = vmatprep.subr.mxu0 0.0
        %636 = vmatpush1.msra.mxu0 0.0
        %637 = vmatprep.subr.mxu0 0.0
        %638 = vmatpush1.msra.mxu0 0.0
        %639 = vmatprep.subr.mxu0 0.0
        %640 = vmatpush1.msra.mxu0 0.0
        %641 = vmatprep.subr.mxu0 0.0
        %642 = vmatpush1.msra.mxu0 0.0
        %643 = vmatprep.subr.mxu0 0.0
        %644 = vmatpush1.msra.mxu0 0.0
        %645 = vmatprep.subr.mxu0 0.0
        %646 = vmatpush1.msra.mxu0 0.0
        %647 = vmatprep.subr.mxu0 0.0
        %648 = vmatpush1.msra.mxu0 0.0
        %649 = vmatprep.subr.mxu0 0.0
        %650 = vmatpush1.msra.mxu0 0.0
        %651 = vmatprep.mubr.f32.mxu0 0.0
        %652 = vmatmul.mubr.f32.gmra.mrb[0].mxu0 %v551
        %v653 = vpop.f32.mrb[0].mxu0
        %v654 = vadd.f32 0.0, %v653
        %v655 = vpop.f32.mrb[0].mxu0
        %656 = vmatprep.mubr.f32.mxu0 0.0
        %657 = vmatmul.mubr.f32.gmra.mrb[0].mxu0 %v554
        %v658 = vpop.f32.mrb[0].mxu0
        %v659 = vadd.f32 0.0, %v658
        %v660 = vpop.f32.mrb[0].mxu0
        %661 = vmatprep.mubr.f32.mxu0 0.0
        %662 = vmatmul.mubr.f32.gmra.mrb[0].mxu0 %v559
        %v663 = vpop.f32.mrb[0].mxu0
        %v664 = vadd.f32 0.0, %v663
        %v665 = vpop.f32.mrb[0].mxu0
        %666 = vmatprep.mubr.f32.mxu0 0.0
        %667 = vmatmul.mubr.f32.gmra.mrb[0].mxu0 %v562
        %v668 = vpop.f32.mrb[0].mxu0
        %v669 = vadd.f32 0.0, %v668
        %v670 = vpop.f32.mrb[0].mxu0
        %671 = vdwg.mxu0
        %v672 = vadd.f32 %v565, %v654
        %v673 = vadd.f32 %v566, %v659
        %v674 = vadd.f32 %v567, %v664
        %v675 = vadd.f32 %v568, %v669
        %676 = vst [vmem:[#allocation2] sm:$0xff] %v672
        %677 = vst [vmem:[#allocation2 + $0x8] sm:$0xff] %v673
        %678 = vst [vmem:[#allocation2 + $0x10] sm:$0xff] %v674
        %679 = vst [vmem:[#allocation2 + $0x18] sm:$0xff] %v675
        %p680 = scmp.eq.s32.totalorder %s26, 24
        // Predicated region
        $region73: #{tpu_custom_call.1} parent=43 // pred_check
          %p681 = pneg %p680
        $region74: #{tpu_custom_call.1} parent=43 // pred_check_branch
          %683 = sbr.rel (%p681) target = $region76
        $region75: #{tpu_custom_call.1} parent=43 // pred_region
          %v684 = vld [vmem:[#allocation2] sm:$0xff]
          %v685 = vld [vmem:[#allocation2 + $0x8] sm:$0xff]
          %v686 = vld [vmem:[#allocation2 + $0x10] sm:$0xff]
          %v687 = vld [vmem:[#allocation2 + $0x18] sm:$0xff]
          %v688 = vmax.f32 %v684, 0.0
          %v689 = vmax.f32 %v685, 0.0
          %v690 = vmax.f32 %v686, 0.0
          %v691 = vmax.f32 %v687, 0.0
          %692 = vst [vmem:[#allocation13] sm:$0xff] %v688
          %693 = vst [vmem:[#allocation13 + $0x8] sm:$0xff] %v689
          %694 = vst [vmem:[#allocation13 + $0x10] sm:$0xff] %v690
          %695 = vst [vmem:[#allocation13 + $0x18] sm:$0xff] %v691
        $region76: #{tpu_custom_call.1} parent=43 // pred_fallthru
          _
        // Predicated region
        $region77: #{tpu_custom_call.1} parent=43 // pred_check
          %p696 = pneg %p189
        $region78: #{tpu_custom_call.1} parent=43 // pred_check_branch
          %698 = sbr.rel (%p696) target = $region80
        $region79: #{tpu_custom_call.1} parent=43 // pred_region
          %s699 = smul.u32 4, %s25
          %s701 = ssub.s32 512, 512
          %702 = vsyncadd [#allocation5], %s701
          %s703 = smul.addr %s699, 128
          %s704 = scalar_lea.hbm %s6, %s703
          %s705 = sshll.u32 [#allocation13], 4
          %s706 = int_to_ptr.vmem [resolvable:$true] %s705
          %711 = dma.vmem_to_hbm [thread:$0]  %s706, 512, %s704, [#allocation5], 128, 128, 8
        $region80: #{tpu_custom_call.1} parent=43 // pred_fallthru
          _
        // Predicated region
        $region81: #{tpu_custom_call.1} parent=43 // pred_check
          %p712 = pneg %p189
        $region82: #{tpu_custom_call.1} parent=43 // pred_check_branch
          %714 = sbr.rel (%p712) target = $region84
        $region83: #{tpu_custom_call.1} parent=43 // pred_region
          %715 = dma.done [#allocation5], 512
        $region84: #{tpu_custom_call.1} parent=43 // pred_fallthru
          _
      $region44: #{tpu_custom_call.1} parent=5 // pred_fallthru
        _
      %p716 = scmp.le.s32.totalorder 2, %s16
      // Predicated region
      $region85: #{tpu_custom_call.1} parent=5 // pred_check
        %p717 = pneg %p716
      $region86: #{tpu_custom_call.1} parent=5 // pred_check_branch
        %719 = sbr.rel (%p717) target = $region88
      $region87: #{tpu_custom_call.1} parent=5 // pred_region
        %s720 = ssub.s32 %s16, 2
      $region88: #{tpu_custom_call.1} parent=5 // pred_fallthru
        _
    $region6: #{tpu_custom_call.1} parent=1 // loop_footer
      %s20 = sadd.s32 1, %s16
    $region7: #{tpu_custom_call.1} parent=1 // loop_footer_branch
      %15 = sbr.rel target = $region3
    $region8: #{tpu_custom_call.1} parent=1 // loop_exit
      _
    %721 = vsyncpa [#allocation4], 1
    %s722 = scalar_lea.sflag [#allocation4], 1
    %723 = vsyncpa %s722, 1
    %724 = vsyncpa [#allocation7], 1
    %725 = vsyncpa [#allocation11], 1
    %726 = vsyncpa [#allocation5], 1
    %s727 = scalar_lea.sflag [#allocation5], 1
    %728 = vsyncpa %s727, 1

</llo_original>
